<compile_context>
chip_gen: v7x
topology: tpu7x:2x2x1
jax: 0.10.0
libtpu: 0.0.40
codegen_flags: <defaults>
</compile_context>

<pallas_src>
import functools

import jax
import jax.numpy as jnp
from jax.experimental import pallas as pl
from jax.experimental.pallas import tpu as pltpu

_IN_DIM = 42
_OUT_DIM = 3


def _affine_kernel(x_ref, w_ref, b_ref, o_ref):
    # x: (tm, 42) f32, w: (42, 3) compute_dtype, b: (1, 3) f32, o: (tm, 3) f32
    x = x_ref[...].astype(w_ref.dtype)            # in-kernel cast, hidden under DMA
    acc = jnp.dot(x, w_ref[...], preferred_element_type=jnp.float32)
    o_ref[...] = acc + b_ref[...]                 # bias add in f32 on the VPU


def _collapse_params(params):
    """Fold the 4 affine layers into a single (42,3) weight and (1,3) bias."""
    w = params["w1"].astype(jnp.float32)
    b = params["b1"].astype(jnp.float32)
    for i in (2, 3, 4):
        wi = params[f"w{i}"].astype(jnp.float32)
        bi = params[f"b{i}"].astype(jnp.float32)
        w = w @ wi
        b = b @ wi + bi
    return w, b


def _round_up(n, m):
    return ((n + m - 1) // m) * m


@functools.partial(
    jax.jit, static_argnames=("compute_dtype", "block_rows", "min_pallas_rows"))
def net_emb_forward(x, params, *, compute_dtype=jnp.bfloat16, block_rows=4096,
                    min_pallas_rows=2048):
    """x: (B, 42) float32. params: dict of (in,out) weights and (1,out) biases."""
    B = x.shape[0]

    # One-time (jit-cached) collapse of the 4 layers.
    w_comb, b_comb = _collapse_params(params)       # (42, 3) f32, (1, 3) f32

    # Small-batch fast path: at tiny B the problem is a few KB and pallas_call
    # overhead dominates — plain XLA wins.
    if B < min_pallas_rows:
        return x.astype(jnp.float32) @ w_comb + b_comb

    w_k = w_comb.astype(compute_dtype)              # weights in compute dtype
    b_k = b_comb                                    # bias stays f32

    # Batch tiling: nb >= 2 grid steps (dual-TC on v7x) and tm a multiple of 8,
    # so padding waste is < 8*nb rows.  The last (partial) block is handled by
    # Pallas OOB masking — no wrapper-side jnp.pad of x.
    if B <= 8:
        tm = B                                      # block equals full batch dim
    else:
        nb = max(pl.cdiv(B, block_rows), 2)
        tm = _round_up(pl.cdiv(B, nb), 8)
    grid = (pl.cdiv(B, tm),)

    w_bytes = _IN_DIM * _OUT_DIM * jnp.dtype(compute_dtype).itemsize
    bytes_accessed = (B * _IN_DIM * 4               # x stream (f32 in)
                      + w_bytes                     # weights (resident)
                      + _OUT_DIM * 4                # bias (resident)
                      + B * _OUT_DIM * 4)           # narrow f32 output stream

    out = pl.pallas_call(
        _affine_kernel,
        out_shape=jax.ShapeDtypeStruct((B, _OUT_DIM), jnp.float32),
        grid=grid,
        in_specs=[
            pl.BlockSpec((tm, _IN_DIM), lambda i: (i, 0)),        # x: batch-tiled
            pl.BlockSpec((_IN_DIM, _OUT_DIM), lambda i: (0, 0)),  # W: resident
            pl.BlockSpec((1, _OUT_DIM), lambda i: (0, 0)),        # b: resident
        ],
        out_specs=pl.BlockSpec((tm, _OUT_DIM), lambda i: (i, 0)),
        compiler_params=pltpu.CompilerParams(
            dimension_semantics=("parallel",),      # shard batch across v7x's 2 TCs
            vmem_limit_bytes=32 * 1024 * 1024,
        ),
        cost_estimate=pl.CostEstimate(
            flops=2 * B * _IN_DIM * _OUT_DIM,
            transcendentals=0,
            bytes_accessed=bytes_accessed,
        ),
    )(x, w_k, b_k)

    return out


def init_params(key):
    """Deterministic init matching nn.Linear shapes (weights kept as (in,out))."""
    dims = [(42, 64), (64, 128), (128, 64), (64, 3)]
    params = {}
    for i, (fan_in, fan_out) in enumerate(dims, start=1):
        key, kw, kb = jax.random.split(key, 3)
        bound = 1.0 / jnp.sqrt(fan_in)
        # PyTorch Linear weight is (out,in); we store its transpose (in,out).
        params[f"w{i}"] = jax.random.uniform(
            kw, (fan_in, fan_out), jnp.float32, -bound, bound)
        params[f"b{i}"] = jax.random.uniform(
            kb, (1, fan_out), jnp.float32, -bound, bound)
    return params


def reference_forward(x, params):
    """Unfused 4-layer f32 reference (matches the PyTorch forward)."""
    h = x @ params["w1"] + params["b1"]
    h = h @ params["w2"] + params["b2"]
    h = h @ params["w3"] + params["b3"]
    return h @ params["w4"] + params["b4"]


if __name__ == "__main__":
    # TODO(synk): the sklearn StandardScaler preprocessing in the original file
    # lives outside the nn.Module forward and is not reproduced here.
    key = jax.random.PRNGKey(0)
    key, kx = jax.random.split(key)

    batch = 100                      # small, misaligned: exercises the partial last block
    x = jax.random.normal(kx, (batch, _IN_DIM), jnp.float32)  # 42-feature board
    params = init_params(key)

    ref = reference_forward(x, params)

    # Pallas path, f32 compute: tight tolerance.  min_pallas_rows=0 forces the
    # kernel even at this small demo batch (grid has 2 steps, last one partial).
    out_f32 = jax.block_until_ready(
        net_emb_forward(x, params, compute_dtype=jnp.float32, min_pallas_rows=0))
    assert out_f32.shape == (batch, _OUT_DIM), out_f32.shape
    assert jnp.allclose(out_f32, ref, atol=1e-4, rtol=1e-4), "f32 mismatch vs reference"

    # Pallas path, bf16 weights (default compute dtype): looser tolerance.
    out_bf16 = jax.block_until_ready(
        net_emb_forward(x, params, min_pallas_rows=0))
    assert out_bf16.shape == (batch, _OUT_DIM), out_bf16.shape
    assert jnp.allclose(out_bf16, ref, atol=1e-2, rtol=1e-2), "bf16 mismatch vs reference"

    # Default dispatch: small batch takes the plain-XLA fast path.
    out_fast = jax.block_until_ready(net_emb_forward(x, params))
    assert out_fast.shape == (batch, _OUT_DIM), out_fast.shape
    assert jnp.allclose(out_fast, ref, atol=1e-4, rtol=1e-4), "fast-path mismatch"

    print("KERNEL_OK")
</pallas_src>

<mosaic_0001>
module attributes {stable_mosaic.version = 11 : i64} {
  func.func @_affine_kernel(%arg0: i32, %arg1: memref<56x42xf32, #tpu.memory_space<vmem>>, %arg2: memref<42x3xf32, #tpu.memory_space<vmem>>, %arg3: memref<1x3xf32, #tpu.memory_space<vmem>>, %arg4: memref<56x3xf32, #tpu.memory_space<vmem>>) attributes {dimension_semantics = [#tpu.dimension_semantics<parallel>], iteration_bounds = array<i64: 2>, scalar_prefetch = 0 : i64, scratch_operands = 0 : i64, tpu.core_type = #tpu.core_type<tc>, window_params = [{transform_indices = @transform_0, window_bounds = array<i64: 56, 42>}, {pipeline_mode = #tpu.pipeline_mode<synchronous>, transform_indices = @transform_1, window_bounds = array<i64: 42, 3>}, {pipeline_mode = #tpu.pipeline_mode<synchronous>, transform_indices = @transform_2, window_bounds = array<i64: 1, 3>}, {transform_indices = @transform_3, window_bounds = array<i64: 56, 3>}]} {
    %c0 = arith.constant 0 : index
    %c0_0 = arith.constant 0 : index
    %0 = vector.load %arg1[%c0, %c0_0] : memref<56x42xf32, #tpu.memory_space<vmem>>, vector<56x42xf32>
    %c0_1 = arith.constant 0 : index
    %c0_2 = arith.constant 0 : index
    %1 = vector.load %arg2[%c0_1, %c0_2] : memref<42x3xf32, #tpu.memory_space<vmem>>, vector<42x3xf32>
    %cst = arith.constant dense<0.000000e+00> : vector<56x3xf32>
    %2 = tpu.matmul %0, %1, %cst {dimension_numbers = #tpu.dot_dimension_numbers<[1], [0], [0], [1], [0, 0, 1, 1], [], []>} : vector<56x42xf32>, vector<42x3xf32>, vector<56x3xf32> -> vector<56x3xf32>
    %c0_3 = arith.constant 0 : index
    %c0_4 = arith.constant 0 : index
    %3 = vector.load %arg3[%c0_3, %c0_4] : memref<1x3xf32, #tpu.memory_space<vmem>>, vector<1x3xf32>
    %4 = vector.broadcast %3 : vector<1x3xf32> to vector<56x3xf32>
    %5 = arith.addf %2, %4 : vector<56x3xf32>
    %c0_5 = arith.constant 0 : index
    %c0_6 = arith.constant 0 : index
    %6 = vector.load %arg4[%c0_5, %c0_6] : memref<56x3xf32, #tpu.memory_space<vmem>>, vector<56x3xf32>
    tpu.vector_store %arg4[%c0_5, %c0_6], %5 {strides = array<i32>} : memref<56x3xf32, #tpu.memory_space<vmem>>, vector<56x3xf32>,
    return
  }
  func.func @transform_0(%arg0: i32) -> (i32, i32) {
    %c0_i32 = arith.constant 0 : i32
    %c0_i32_0 = arith.constant 0 : i32
    return %arg0, %c0_i32 : i32, i32
  }
  func.func @transform_1(%arg0: i32) -> (i32, i32) {
    %c0_i32 = arith.constant 0 : i32
    %c0_i32_0 = arith.constant 0 : i32
    %c0_i32_1 = arith.constant 0 : i32
    return %c0_i32, %c0_i32_0 : i32, i32
  }
  func.func @transform_2(%arg0: i32) -> (i32, i32) {
    %c0_i32 = arith.constant 0 : i32
    %c0_i32_0 = arith.constant 0 : i32
    %c0_i32_1 = arith.constant 0 : i32
    return %c0_i32, %c0_i32_0 : i32, i32
  }
  func.func @transform_3(%arg0: i32) -> (i32, i32) {
    %c0_i32 = arith.constant 0 : i32
    %c0_i32_0 = arith.constant 0 : i32
    return %arg0, %c0_i32 : i32, i32
  }
}

</mosaic_0001>

<llo_original>
// kernel: net_emb_forward.1
$region0: #{net_emb_forward.1}
  #allocation0 [shape = 'u32[]', space=smem, size = 0x4, offset = 0x4, fixed_abs, tag = 'smem constant byte address 0x4 - core index']
  #allocation1 [shape = 'u32[144,128]{1,0:T(1,128)}', space=vmem, size = 0x12000, scoped, tag = 'internal scratch']
  %s0 = inlined_call_operand.vmem [shape: f32[100,42], index: 0, kind: input, shape index: {}]
  %s1 = inlined_call_operand.vmem [shape: f32[42,3], index: 1, kind: input, shape index: {}]
  %s2 = inlined_call_operand.vmem [shape: f32[1,3], index: 2, kind: input, shape index: {}]
  %s3 = inlined_call_operand.vmem [shape: f32[100,3], index: 3, kind: output, shape index: {}]
  %s4 = sld [smem:[#allocation0]]
  $region93: #{net_emb_forward.1} parent=0
    _
  %s6 = ssub.s32 1, %s4
  %s7 = scalar_select 0, %s6, %s4
  $region1: #{net_emb_forward.1} parent=0
    #allocation2 [shape = 'u8[57344]{0}', space=vmem, size = 0xe000, scoped, tag = 'output window, operand 0']
    loop: start=0, step=1, limit=4
    $region2: #{net_emb_forward.1} parent=1 // loop_pre_header
      _
    $region3: #{net_emb_forward.1} parent=1 // loop_header
      %s9 = sphi 0, %s13
      %p10 = scmp.ge.s32.totalorder %s9, 4
      %s19 = sphi 0, %s21
      %s22 = sphi 0, %s19
      %s23 = sphi 0, %s22
      %s39 = sphi 0, %s23
      %s43 = sphi 0, %s43
      %s45 = sphi 0, %s43
      %s46 = sphi 0, %s45
      %s60 = sphi 0, %s46
      %s64 = sphi 0, %s64
      %s66 = sphi 0, %s64
      %s67 = sphi 0, %s66
      %s81 = sphi 0, %s67
      %s87 = sphi 0, %s89
      %s90 = sphi 0, %s87
      %s91 = sphi 0, %s90
      %s107 = sphi 0, %s91
    $region4: #{net_emb_forward.1} parent=1 // loop_header_branch
      %12 = sbr.rel (%p10) target = $region8
    $region5: #{net_emb_forward.1} parent=1 // loop_body
      %s14 = ssub.s32 %s9, 1
      %s15 = ssub.s32 %s9, 2
      %s16 = sadd.s32 %s9, 1
      %s17 = ssub.s32 %s9, %s16
      %p18 = scmp.eq.s32.totalorder %s17, 0
      %s20 = sadd.s32 %s19, 1
      %s21 = scalar_select %p18, %s19, %s20
      %p24 = pneg %p18
      %p25 = scmp.eq.s32.totalorder %s9, 1
      %p26 = por %p24, %p25
      %p27 = scmp.ne.s32.totalorder %s19, %s22
      %p28 = scmp.eq.s32.totalorder %s9, 0
      %p29 = por %p27, %p28
      %p30 = scmp.ne.s32.totalorder %s19, %s22
      %p31 = scmp.eq.s32.totalorder %s14, 1
      %p32 = por %p30, %p31
      %p33 = scmp.ne.s32.totalorder %s22, %s23
      %p34 = scmp.eq.s32.totalorder %s14, 0
      %p35 = por %p33, %p34
      %p36 = scmp.ne.s32.totalorder %s22, %s23
      %p37 = scmp.eq.s32.totalorder %s15, 1
      %p38 = por %p36, %p37
      %p40 = scmp.ne.s32.totalorder %s23, %s39
      %p41 = scmp.eq.s32.totalorder %s15, 0
      %p42 = por %p40, %p41
      %s44 = sadd.s32 %s43, 1
      %p47 = scmp.eq.s32.totalorder %s9, 1
      %p48 = scmp.ne.s32.totalorder %s43, %s45
      %p49 = scmp.eq.s32.totalorder %s9, 0
      %p50 = por %p48, %p49
      %p51 = scmp.ne.s32.totalorder %s43, %s45
      %p52 = scmp.eq.s32.totalorder %s14, 1
      %p53 = por %p51, %p52
      %p54 = scmp.ne.s32.totalorder %s45, %s46
      %p55 = scmp.eq.s32.totalorder %s14, 0
      %p56 = por %p54, %p55
      %p57 = scmp.ne.s32.totalorder %s45, %s46
      %p58 = scmp.eq.s32.totalorder %s15, 1
      %p59 = por %p57, %p58
      %p61 = scmp.ne.s32.totalorder %s46, %s60
      %p62 = scmp.eq.s32.totalorder %s15, 0
      %p63 = por %p61, %p62
      %s65 = sadd.s32 %s64, 1
      %p68 = scmp.eq.s32.totalorder %s9, 1
      %p69 = scmp.ne.s32.totalorder %s64, %s66
      %p70 = scmp.eq.s32.totalorder %s9, 0
      %p71 = por %p69, %p70
      %p72 = scmp.ne.s32.totalorder %s64, %s66
      %p73 = scmp.eq.s32.totalorder %s14, 1
      %p74 = por %p72, %p73
      %p75 = scmp.ne.s32.totalorder %s66, %s67
      %p76 = scmp.eq.s32.totalorder %s14, 0
      %p77 = por %p75, %p76
      %p78 = scmp.ne.s32.totalorder %s66, %s67
      %p79 = scmp.eq.s32.totalorder %s15, 1
      %p80 = por %p78, %p79
      %p82 = scmp.ne.s32.totalorder %s67, %s81
      %p83 = scmp.eq.s32.totalorder %s15, 0
      %p84 = por %p82, %p83
      %s85 = ssub.s32 %s9, %s16
      %p86 = scmp.eq.s32.totalorder %s85, 0
      %s88 = sadd.s32 %s87, 1
      %s89 = scalar_select %p86, %s87, %s88
      %p92 = pneg %p86
      %p93 = scmp.eq.s32.totalorder %s9, 1
      %p94 = por %p92, %p93
      %p95 = scmp.ne.s32.totalorder %s87, %s90
      %p96 = scmp.eq.s32.totalorder %s9, 0
      %p97 = por %p95, %p96
      %p98 = scmp.ne.s32.totalorder %s87, %s90
      %p99 = scmp.eq.s32.totalorder %s14, 1
      %p100 = por %p98, %p99
      %p101 = scmp.ne.s32.totalorder %s90, %s91
      %p102 = scmp.eq.s32.totalorder %s14, 0
      %p103 = por %p101, %p102
      %p104 = scmp.ne.s32.totalorder %s90, %s91
      %p105 = scmp.eq.s32.totalorder %s15, 1
      %p106 = por %p104, %p105
      %p108 = scmp.ne.s32.totalorder %s91, %s107
      %p109 = scmp.eq.s32.totalorder %s15, 0
      %p110 = por %p108, %p109
      %p111 = scmp.le.s32.totalorder 1, %s9
      %p112 = scmp.lt.s32.totalorder %s9, 3
      %p113 = pnand %p111, %p112
      %p114 = pneg %p113
      // Predicated region
      $region9: #{net_emb_forward.1} parent=5 // pred_check
        _
      $region10: #{net_emb_forward.1} parent=5 // pred_check_branch
        %116 = sbr.rel (%p113) target = $region12
      $region11: #{net_emb_forward.1} parent=5 // pred_region
        %s117 = ssub.s32 %s9, 1
        // Predicated region
        $region13: #{net_emb_forward.1} parent=11 // pred_check
          %p118 = pneg %p56
        $region14: #{net_emb_forward.1} parent=11 // pred_check_branch
          %120 = sbr.rel (%p118) target = $region16
        $region15: #{net_emb_forward.1} parent=11 // pred_region
          _
        $region16: #{net_emb_forward.1} parent=11 // pred_fallthru
          _
        // Predicated region
        $region17: #{net_emb_forward.1} parent=11 // pred_check
          %p121 = pneg %p77
        $region18: #{net_emb_forward.1} parent=11 // pred_check_branch
          %123 = sbr.rel (%p121) target = $region20
        $region19: #{net_emb_forward.1} parent=11 // pred_region
          _
        $region20: #{net_emb_forward.1} parent=11 // pred_fallthru
          _
      $region12: #{net_emb_forward.1} parent=5 // pred_fallthru
        _
      %p124 = scmp.lt.s32.totalorder %s9, 2
      // Predicated region
      $region21: #{net_emb_forward.1} parent=5 // pred_check
        %p125 = pneg %p124
      $region22: #{net_emb_forward.1} parent=5 // pred_check_branch
        %127 = sbr.rel (%p125) target = $region24
      $region23: #{net_emb_forward.1} parent=5 // pred_region
        // Predicated region
        $region25: #{net_emb_forward.1} parent=23 // pred_check
          %p128 = pneg %p29
        $region26: #{net_emb_forward.1} parent=23 // pred_check_branch
          %130 = sbr.rel (%p128) target = $region28
        $region27: #{net_emb_forward.1} parent=23 // pred_region
          %s131 = smul.u32 7, %s9
          %s132 = ssub.s32 13, %s131
          %p133 = scmp.lt.s32.totalorder %s132, 7
          %s134 = scalar_select %p133, %s132, 7
          %s135 = smul.u32 128, %s134
          %p136 = scmp.lt.s32.totalorder %s131, 12
          %s137 = scalar_select %p136, %s131, 12
          %s138 = smul.addr %s137, 8
          %s139 = scalar_lea.vmem %s0, %s138
          %s140 = smul.u32 7, %s9
          %s141 = ssub.s32 13, %s140
          %p142 = scmp.lt.s32.totalorder %s141, 7
          %s143 = scalar_select %p142, %s141, 7
          %s144 = smul.u32 128, %s143
        $region28: #{net_emb_forward.1} parent=23 // pred_fallthru
          _
      $region24: #{net_emb_forward.1} parent=5 // pred_fallthru
        _
      %p145 = scmp.le.s32.totalorder 1, %s9
      %p146 = scmp.lt.s32.totalorder %s9, 3
      %p147 = pnand %p145, %p146
      %p148 = pneg %p147
      // Predicated region
      $region29: #{net_emb_forward.1} parent=5 // pred_check
        _
      $region30: #{net_emb_forward.1} parent=5 // pred_check_branch
        %150 = sbr.rel (%p147) target = $region32
      $region31: #{net_emb_forward.1} parent=5 // pred_region
        %s151 = ssub.s32 %s9, 1
        %s152 = smul.u32 7, %s14
        %s153 = ssub.s32 13, %s152
        %p154 = scmp.lt.s32.totalorder %s153, 7
        %s155 = scalar_select %p154, %s153, 7
        %s156 = smul.u32 128, %s155
        %p157 = scmp.lt.s32.totalorder %s152, 12
        %s158 = scalar_select %p157, %s152, 12
        %s159 = smul.addr %s158, 8
        %s160 = scalar_lea.vmem %s0, %s159
        %p161 = pneg %p35
        %p162 = pneg %p32
        %p163 = pneg %p56
        %p164 = pneg %p53
        %p165 = pneg %p77
        %p166 = pneg %p74
        %p167 = pneg %p103
        %p168 = pneg %p100
        %s169 = sand.u32 %s90, 1
        %s170 = sand.u32 %s90, 1
        %s171 = smul.addr %s170, 56
        %s172 = scalar_lea.vmem [#allocation2], %s171
        %s173 = smul.u32 7, %s14
        %s174 = ssub.s32 13, %s173
        %p175 = scmp.lt.s32.totalorder %s174, 7
        %s176 = scalar_select %p175, %s174, 7
        %s177 = smul.u32 128, %s176
        %p178 = scmp.lt.s32.totalorder %s173, 12
        %s179 = scalar_select %p178, %s173, 12
        %s180 = smul.addr %s179, 8
        %s181 = scalar_lea.vmem %s0, %s180
        %s182 = smul.u32 7, %s14
        %s183 = ssub.s32 13, %s182
        %p184 = scmp.lt.s32.totalorder %s183, 7
        %s185 = scalar_select %p184, %s183, 7
        %s186 = smul.u32 128, %s185
        %s187 = smul.u32 7, %s14
        %s188 = ssub.s32 13, %s187
        %p189 = scmp.lt.s32.totalorder %s188, 7
        %s190 = scalar_select %p189, %s188, 7
        %s191 = smul.u32 128, %s190
        %v192 = vld [vmem:[%s181] sm:$0xff]
        %v193 = vld [vmem:[%s181 + $0x8] sm:$0xff]
        %v194 = vld [vmem:[%s181 + $0x10] sm:$0xff]
        %v195 = vld [vmem:[%s181 + $0x18] sm:$0xff]
        %v196 = vld [vmem:[%s181 + $0x20] sm:$0xff]
        %v197 = vld [vmem:[%s181 + $0x28] sm:$0xff]
        %v198 = vld [vmem:[%s181 + $0x30] sm:$0xff]
        %v199 = vld [vmem:[%s1] sm:$0xff]
        %v200 = vld [vmem:[%s1 + $0x8] sm:$0xff]
        %v201 = vld [vmem:[%s1 + $0x10] sm:$0xff]
        %v202 = vld [vmem:[%s1 + $0x18] sm:$0xff]
        %v203 = vld [vmem:[%s1 + $0x20] sm:$0xff]
        %v204 = vld [vmem:[%s1 + $0x28] sm:$0x3]
        %v205 = vld [vmem:[%s2] sm:$0x1]
        %v207 = vlaneseq
        %v208 = vshrl.u32 %v207, 7
        %v209 = vsub.s32 0, %v208
        %v210 = vrot.slane %v205, %v209
        %vm212 = vcmask 343040
        %v214 = vsel %vm212, %v192, 0
        %v217 = vsel %vm212, %v193, 0
        %v220 = vsel %vm212, %v194, 0
        %v223 = vsel %vm212, %v195, 0
        %v226 = vsel %vm212, %v196, 0
        %v229 = vsel %vm212, %v197, 0
        %v232 = vsel %vm212, %v198, 0
        %vm234 = vcmask 1041408
        %v236 = vsel %vm234, %v204, 0
        %238 = vmatprep.subr.mxu0 0.0
        %239 = vmatpush1.msra.mxu0 %v199
        %240 = vmatprep.subr.mxu0 0.0
        %241 = vmatpush1.msra.mxu0 %v200
        %242 = vmatprep.subr.mxu0 0.0
        %243 = vmatpush1.msra.mxu0 %v201
        %244 = vmatprep.subr.mxu0 0.0
        %245 = vmatpush1.msra.mxu0 %v202
        %246 = vmatprep.subr.mxu0 0.0
        %247 = vmatpush1.msra.mxu0 %v203
        %248 = vmatprep.subr.mxu0 0.0
        %249 = vmatpush1.msra.mxu0 %v236
        %250 = vmatprep.subr.mxu0 0.0
        %251 = vmatpush1.msra.mxu0 0.0
        %252 = vmatprep.subr.mxu0 0.0
        %253 = vmatpush1.msra.mxu0 0.0
        %254 = vmatprep.subr.mxu0 0.0
        %255 = vmatpush1.msra.mxu0 0.0
        %256 = vmatprep.subr.mxu0 0.0
        %257 = vmatpush1.msra.mxu0 0.0
        %258 = vmatprep.subr.mxu0 0.0
        %259 = vmatpush1.msra.mxu0 0.0
        %260 = vmatprep.subr.mxu0 0.0
        %261 = vmatpush1.msra.mxu0 0.0
        %262 = vmatprep.subr.mxu0 0.0
        %263 = vmatpush1.msra.mxu0 0.0
        %264 = vmatprep.subr.mxu0 0.0
        %265 = vmatpush1.msra.mxu0 0.0
        %266 = vmatprep.subr.mxu0 0.0
        %267 = vmatpush1.msra.mxu0 0.0
        %268 = vmatprep.subr.mxu0 0.0
        %269 = vmatpush1.msra.mxu0 0.0
        %270 = vmatprep.subr.mxu0 0.0
        %271 = vmatpush1.msra.mxu0 0.0
        %272 = vmatprep.subr.mxu0 0.0
        %273 = vmatpush1.msra.mxu0 0.0
        %274 = vmatprep.subr.mxu0 0.0
        %275 = vmatpush1.msra.mxu0 0.0
        %276 = vmatprep.subr.mxu0 0.0
        %277 = vmatpush1.msra.mxu0 0.0
        %278 = vmatprep.subr.mxu0 0.0
        %279 = vmatpush1.msra.mxu0 0.0
        %280 = vmatprep.subr.mxu0 0.0
        %281 = vmatpush1.msra.mxu0 0.0
        %282 = vmatprep.subr.mxu0 0.0
        %283 = vmatpush1.msra.mxu0 0.0
        %284 = vmatprep.subr.mxu0 0.0
        %285 = vmatpush1.msra.mxu0 0.0
        %286 = vmatprep.subr.mxu0 0.0
        %287 = vmatpush1.msra.mxu0 0.0
        %288 = vmatprep.subr.mxu0 0.0
        %289 = vmatpush1.msra.mxu0 0.0
        %290 = vmatprep.subr.mxu0 0.0
        %291 = vmatpush1.msra.mxu0 0.0
        %292 = vmatprep.subr.mxu0 0.0
        %293 = vmatpush1.msra.mxu0 0.0
        %294 = vmatprep.subr.mxu0 0.0
        %295 = vmatpush1.msra.mxu0 0.0
        %296 = vmatprep.subr.mxu0 0.0
        %297 = vmatpush1.msra.mxu0 0.0
        %298 = vmatprep.subr.mxu0 0.0
        %299 = vmatpush1.msra.mxu0 0.0
        %300 = vmatprep.subr.mxu0 0.0
        %301 = vmatpush1.msra.mxu0 0.0
        %302 = vmatprep.mubr.f32.mxu0 0.0
        %303 = vmatmul.mubr.f32.gmra.mrb[0].mxu0 %v214
        %v304 = vpop.f32.mrb[0].mxu0
        %v305 = vadd.f32 %v210, %v304
        %v306 = vpop.f32.mrb[0].mxu0
        %307 = vmatprep.mubr.f32.mxu0 0.0
        %308 = vmatmul.mubr.f32.gmra.mrb[0].mxu0 %v217
        %v309 = vpop.f32.mrb[0].mxu0
        %v310 = vadd.f32 %v210, %v309
        %v311 = vpop.f32.mrb[0].mxu0
        %312 = vmatprep.mubr.f32.mxu0 0.0
        %313 = vmatmul.mubr.f32.gmra.mrb[0].mxu0 %v220
        %v314 = vpop.f32.mrb[0].mxu0
        %v315 = vadd.f32 %v210, %v314
        %v316 = vpop.f32.mrb[0].mxu0
        %317 = vmatprep.mubr.f32.mxu0 0.0
        %318 = vmatmul.mubr.f32.gmra.mrb[0].mxu0 %v223
        %v319 = vpop.f32.mrb[0].mxu0
        %v320 = vadd.f32 %v210, %v319
        %v321 = vpop.f32.mrb[0].mxu0
        %322 = vmatprep.mubr.f32.mxu0 0.0
        %323 = vmatmul.mubr.f32.gmra.mrb[0].mxu0 %v226
        %v324 = vpop.f32.mrb[0].mxu0
        %v325 = vadd.f32 %v210, %v324
        %v326 = vpop.f32.mrb[0].mxu0
        %327 = vmatprep.mubr.f32.mxu0 0.0
        %328 = vmatmul.mubr.f32.gmra.mrb[0].mxu0 %v229
        %v329 = vpop.f32.mrb[0].mxu0
        %v330 = vadd.f32 %v210, %v329
        %v331 = vpop.f32.mrb[0].mxu0
        %332 = vmatprep.mubr.f32.mxu0 0.0
        %333 = vmatmul.mubr.f32.gmra.mrb[0].mxu0 %v232
        %v334 = vpop.f32.mrb[0].mxu0
        %v335 = vadd.f32 %v210, %v334
        %v336 = vpop.f32.mrb[0].mxu0
        %337 = vdwg.mxu0
        %vm338 = vcmask 23552
        %339 = vst.msk [vmem:[%s172] sm:$0xff] %vm338, %v305
        %340 = vst.msk [vmem:[%s172 + $0x8] sm:$0xff] %vm338, %v310
        %341 = vst.msk [vmem:[%s172 + $0x10] sm:$0xff] %vm338, %v315
        %342 = vst.msk [vmem:[%s172 + $0x18] sm:$0xff] %vm338, %v320
        %343 = vst.msk [vmem:[%s172 + $0x20] sm:$0xff] %vm338, %v325
        %344 = vst.msk [vmem:[%s172 + $0x28] sm:$0xff] %vm338, %v330
        %345 = vst.msk [vmem:[%s172 + $0x30] sm:$0xff] %vm338, %v335
        %s346 = sand.u32 %s90, 1
        %s347 = sand.u32 %s90, 1
        %s348 = smul.addr %s347, 56
        %s349 = scalar_lea.vmem [#allocation2], %s348
        // Predicated region
        $region33: #{net_emb_forward.1} parent=31 // pred_check
          %p350 = pneg %p100
        $region34: #{net_emb_forward.1} parent=31 // pred_check_branch
          %352 = sbr.rel (%p350) target = $region36
        $region35: #{net_emb_forward.1} parent=31 // pred_region
          %s353 = smul.u32 7, %s14
          %s354 = ssub.s32 13, %s353
          %p355 = scmp.lt.s32.totalorder %s354, 7
          %s356 = scalar_select %p355, %s354, 7
          %s357 = smul.u32 128, %s356
          %p358 = scmp.ne.s32.totalorder 0, %s357
          %s359 = smul.addr %s353, 8
          %s360 = scalar_lea.vmem %s3, %s359
          // Predicated region
          $region37: #{net_emb_forward.1} parent=35 // pred_check
            %p361 = pneg %p358
          $region38: #{net_emb_forward.1} parent=35 // pred_check_branch
            %363 = sbr.rel (%p361) target = $region40
          $region39: #{net_emb_forward.1} parent=35 // pred_region
            // Predicated region
            $region41: #{net_emb_forward.1} parent=39 // pred_check
              _
            $region42: #{net_emb_forward.1} parent=39 // pred_check_branch
              %365 = sbr.rel (0) target = $region44
            $region43: #{net_emb_forward.1} parent=39 // pred_region
              // Predicated region
              $region63: #{net_emb_forward.1} parent=43 // pred_check
                _
              $region64: #{net_emb_forward.1} parent=43 // pred_check_branch
                %427 = sbr.rel (0) target = $region66
              $region65: #{net_emb_forward.1} parent=43 // pred_region
                %s428 = sdiv.u32.pop %s356, 7
                %s429 = srem.u32.pop %s356, 7
                // While loop
                $region67: #{net_emb_forward.1} parent=65 // loop_pre_header
                  _
                $region68: #{net_emb_forward.1} parent=65 // loop_header
                  %s431 = sphi 0, %s433
                  %p432 = scmp.ge.s32.totalorder %s431, %s428
                  %s436 = sphi 0, %s455
                  %s437 = sphi %s349, %s458
                  %s438 = sphi %s360, %s459
                $region69: #{net_emb_forward.1} parent=65 // loop_header_branch
                  %435 = sbr.rel (%p432) target = $region73
                $region70: #{net_emb_forward.1} parent=65 // loop_body
                  %v439 = vld [vmem:[%s437] sm:$0xff]
                  %440 = vst [vmem:[%s438] sm:$0xff] %v439
                  %v441 = vld [vmem:[%s437 + $0x8] sm:$0xff]
                  %442 = vst [vmem:[%s438 + $0x8] sm:$0xff] %v441
                  %v443 = vld [vmem:[%s437 + $0x10] sm:$0xff]
                  %444 = vst [vmem:[%s438 + $0x10] sm:$0xff] %v443
                  %v445 = vld [vmem:[%s437 + $0x18] sm:$0xff]
                  %446 = vst [vmem:[%s438 + $0x18] sm:$0xff] %v445
                  %v447 = vld [vmem:[%s437 + $0x20] sm:$0xff]
                  %448 = vst [vmem:[%s438 + $0x20] sm:$0xff] %v447
                  %v449 = vld [vmem:[%s437 + $0x28] sm:$0xff]
                  %450 = vst [vmem:[%s438 + $0x28] sm:$0xff] %v449
                  %v451 = vld [vmem:[%s437 + $0x30] sm:$0xff]
                  %452 = vst [vmem:[%s438 + $0x30] sm:$0xff] %v451
                  %s453 = sadd.s32 1, %s436
                  %p454 = scmp.ge.s32.totalorder %s453, %s428
                  %s455 = scalar_select %p454, 0, %s453
                  %s456 = smul.u32 %s455, 56
                  %s457 = smul.u32 %s455, 56
                  %s458 = scalar_lea.vmem %s349, %s456 [#allocation2]
                  %s459 = scalar_lea.vmem %s360, %s457
                $region71: #{net_emb_forward.1} parent=65 // loop_footer
                  %s433 = sadd.s32 %s431, 1
                $region72: #{net_emb_forward.1} parent=65 // loop_footer_branch
                  %430 = sbr.rel target = $region68
                $region73: #{net_emb_forward.1} parent=65 // loop_exit
                  _
                %s460 = sdiv.u32.pop %s356, 7
                %s461 = srem.u32.pop %s356, 7
                %s462 = smul.u32 %s460, 7
                %s463 = smul.u32 8, %s462
                %s464 = scalar_lea.vmem %s349, %s463 [#allocation2]
                %s465 = smul.u32 8, %s462
                %s466 = scalar_lea.vmem %s360, %s465
                // While loop
                $region74: #{net_emb_forward.1} parent=65 // loop_pre_header
                  _
                $region75: #{net_emb_forward.1} parent=65 // loop_header
                  %s468 = sphi 0, %s470
                  %p469 = scmp.ge.s32.totalorder %s468, %s461
                  %s473 = sphi 0, %s480
                  %s474 = sphi %s464, %s483
                  %s475 = sphi %s466, %s484
                $region76: #{net_emb_forward.1} parent=65 // loop_header_branch
                  %472 = sbr.rel (%p469) target = $region80
                $region77: #{net_emb_forward.1} parent=65 // loop_body
                  %v476 = vld [vmem:[%s474] sm:$0xff]
                  %477 = vst [vmem:[%s475] sm:$0xff] %v476
                  %s478 = sadd.s32 1, %s473
                  %p479 = scmp.ge.s32.totalorder %s478, %s461
                  %s480 = scalar_select %p479, 0, %s478
                  %s481 = smul.u32 %s480, 8
                  %s482 = smul.u32 %s480, 8
                  %s483 = scalar_lea.vmem %s464, %s481 [#allocation2]
                  %s484 = scalar_lea.vmem %s466, %s482
                $region78: #{net_emb_forward.1} parent=65 // loop_footer
                  %s470 = sadd.s32 %s468, 1
                $region79: #{net_emb_forward.1} parent=65 // loop_footer_branch
                  %467 = sbr.rel target = $region75
                $region80: #{net_emb_forward.1} parent=65 // loop_exit
                  _
              $region66: #{net_emb_forward.1} parent=43 // pred_fallthru
                _
              // Predicated region
              $region81: #{net_emb_forward.1} parent=43 // pred_check
                _
              $region82: #{net_emb_forward.1} parent=43 // pred_check_branch
                %486 = sbr.rel target = $region84
              $region83: #{net_emb_forward.1} parent=43 // pred_region
                _
              $region84: #{net_emb_forward.1} parent=43 // pred_fallthru
                _
            $region44: #{net_emb_forward.1} parent=39 // pred_fallthru
              _
            // Predicated region
            $region45: #{net_emb_forward.1} parent=39 // pred_check
              _
            $region46: #{net_emb_forward.1} parent=39 // pred_check_branch
              %367 = sbr.rel target = $region48
            $region47: #{net_emb_forward.1} parent=39 // pred_region
              %s369 = sdiv.u32.pop %s356, 7
              %s370 = srem.u32.pop %s356, 7
              // While loop
              $region49: #{net_emb_forward.1} parent=47 // loop_pre_header
                _
              $region50: #{net_emb_forward.1} parent=47 // loop_header
                %s372 = sphi 0, %s374
                %p373 = scmp.ge.s32.totalorder %s372, %s369
                %s377 = sphi 0, %s396
                %s378 = sphi %s349, %s399
                %s379 = sphi %s360, %s400
              $region51: #{net_emb_forward.1} parent=47 // loop_header_branch
                %376 = sbr.rel (%p373) target = $region55
              $region52: #{net_emb_forward.1} parent=47 // loop_body
                %v380 = vld [vmem:[%s378] sm:$0xff]
                %381 = vst [vmem:[%s379] sm:$0xff] %v380
                %v382 = vld [vmem:[%s378 + $0x8] sm:$0xff]
                %383 = vst [vmem:[%s379 + $0x8] sm:$0xff] %v382
                %v384 = vld [vmem:[%s378 + $0x10] sm:$0xff]
                %385 = vst [vmem:[%s379 + $0x10] sm:$0xff] %v384
                %v386 = vld [vmem:[%s378 + $0x18] sm:$0xff]
                %387 = vst [vmem:[%s379 + $0x18] sm:$0xff] %v386
                %v388 = vld [vmem:[%s378 + $0x20] sm:$0xff]
                %389 = vst [vmem:[%s379 + $0x20] sm:$0xff] %v388
                %v390 = vld [vmem:[%s378 + $0x28] sm:$0xff]
                %391 = vst [vmem:[%s379 + $0x28] sm:$0xff] %v390
                %v392 = vld [vmem:[%s378 + $0x30] sm:$0xff]
                %393 = vst [vmem:[%s379 + $0x30] sm:$0xff] %v392
                %s394 = sadd.s32 1, %s377
                %p395 = scmp.ge.s32.totalorder %s394, %s369
                %s396 = scalar_select %p395, 0, %s394
                %s397 = smul.u32 %s396, 56
                %s398 = smul.u32 %s396, 56
                %s399 = scalar_lea.vmem %s349, %s397 [#allocation2]
                %s400 = scalar_lea.vmem %s360, %s398
              $region53: #{net_emb_forward.1} parent=47 // loop_footer
                %s374 = sadd.s32 %s372, 1
              $region54: #{net_emb_forward.1} parent=47 // loop_footer_branch
                %371 = sbr.rel target = $region50
              $region55: #{net_emb_forward.1} parent=47 // loop_exit
                _
              %s401 = sdiv.u32.pop %s356, 7
              %s402 = srem.u32.pop %s356, 7
              %s403 = smul.u32 %s401, 7
              %s404 = smul.u32 8, %s403
              %s405 = scalar_lea.vmem %s349, %s404 [#allocation2]
              %s406 = smul.u32 8, %s403
              %s407 = scalar_lea.vmem %s360, %s406
              // While loop
              $region56: #{net_emb_forward.1} parent=47 // loop_pre_header
                _
              $region57: #{net_emb_forward.1} parent=47 // loop_header
                %s409 = sphi 0, %s411
                %p410 = scmp.ge.s32.totalorder %s409, %s402
                %s414 = sphi 0, %s421
                %s415 = sphi %s405, %s424
                %s416 = sphi %s407, %s425
              $region58: #{net_emb_forward.1} parent=47 // loop_header_branch
                %413 = sbr.rel (%p410) target = $region62
              $region59: #{net_emb_forward.1} parent=47 // loop_body
                %v417 = vld [vmem:[%s415] sm:$0xff]
                %418 = vst [vmem:[%s416] sm:$0xff] %v417
                %s419 = sadd.s32 1, %s414
                %p420 = scmp.ge.s32.totalorder %s419, %s402
                %s421 = scalar_select %p420, 0, %s419
                %s422 = smul.u32 %s421, 8
                %s423 = smul.u32 %s421, 8
                %s424 = scalar_lea.vmem %s405, %s422 [#allocation2]
                %s425 = scalar_lea.vmem %s407, %s423
              $region60: #{net_emb_forward.1} parent=47 // loop_footer
                %s411 = sadd.s32 %s409, 1
              $region61: #{net_emb_forward.1} parent=47 // loop_footer_branch
                %408 = sbr.rel target = $region57
              $region62: #{net_emb_forward.1} parent=47 // loop_exit
                _
            $region48: #{net_emb_forward.1} parent=39 // pred_fallthru
              _
          $region40: #{net_emb_forward.1} parent=35 // pred_fallthru
            _
          %487 = vnop
        $region36: #{net_emb_forward.1} parent=31 // pred_fallthru
          _
      $region32: #{net_emb_forward.1} parent=5 // pred_fallthru
        _
      %p488 = scmp.le.s32.totalorder 2, %s9
      // Predicated region
      $region85: #{net_emb_forward.1} parent=5 // pred_check
        %p489 = pneg %p488
      $region86: #{net_emb_forward.1} parent=5 // pred_check_branch
        %491 = sbr.rel (%p489) target = $region88
      $region87: #{net_emb_forward.1} parent=5 // pred_region
        %s492 = ssub.s32 %s9, 2
        // Predicated region
        $region89: #{net_emb_forward.1} parent=87 // pred_check
          %p493 = pneg %p106
        $region90: #{net_emb_forward.1} parent=87 // pred_check_branch
          %495 = sbr.rel (%p493) target = $region92
        $region91: #{net_emb_forward.1} parent=87 // pred_region
          %s496 = sand.u32 %s91, 1
          %s497 = sand.u32 %s91, 1
          %s498 = smul.addr %s497, 56
          %s499 = scalar_lea.vmem [#allocation2], %s498
        $region92: #{net_emb_forward.1} parent=87 // pred_fallthru
          _
      $region88: #{net_emb_forward.1} parent=5 // pred_fallthru
        _
    $region6: #{net_emb_forward.1} parent=1 // loop_footer
      %s13 = sadd.s32 1, %s9
    $region7: #{net_emb_forward.1} parent=1 // loop_footer_branch
      %8 = sbr.rel target = $region3
    $region8: #{net_emb_forward.1} parent=1 // loop_exit
      _

</llo_original>
